<compile_context>
chip_gen: v7x
topology: tpu7x:2x2x1
jax: 0.10.0
libtpu: 0.0.40
codegen_flags: <defaults>
</compile_context>

<pallas_src>
import jax
import jax.numpy as jnp
from jax.experimental import pallas as pl
from jax.experimental.pallas import tpu as pltpu


def _round_up(x, m):
    return (x + m - 1) // m * m


# ----------------------------------------------------------------------------
# Glue: dense per-batch uniform-Laplacian blocks from faces (plain JAX).
# Mirrors the torch.sparse_coo_tensor construction in __init__ (duplicate
# indices are summed, exactly like sparse COO coalescing).  Batches never
# interact in the block-diagonal matrix, so per-batch (nv, nv) blocks are
# semantically identical.
# ----------------------------------------------------------------------------
def build_uniform_laplacian(faces, nv):
    """faces: (B, F, deg) int32 vertex indices in [0, nv).

    Returns:
      L   : (B, nv, nv) float32 dense Laplacian blocks (symmetric)
      Lii : (B, nv)     float32 diagonal (degree) entries
    """
    B, F, deg = faces.shape
    row = faces.reshape(B, -1)                                 # faces[:, :, j]
    col = jnp.roll(faces, shift=-1, axis=-1).reshape(B, -1)    # faces[:, :, (j+1)%deg]

    A = jnp.zeros((B, nv, nv), jnp.float32)
    b_idx = jnp.broadcast_to(jnp.arange(B)[:, None], row.shape)
    A = A.at[b_idx, row, col].add(-1.0)                        # duplicates accumulate

    L = jnp.swapaxes(A, 1, 2) + A                              # L = L.t() + L  (symmetric)
    Lii = -jnp.sum(L, axis=2)                                  # -sparse.sum(L, dim=1)
    L = L + jnp.eye(nv, dtype=jnp.float32)[None] * Lii[:, :, None]
    return L, Lii


def prepare_laplacian_operands(L, Lii):
    """'__init__-time' hoist: pad L/Lii to lane granularity and cast L to bf16.

    Done once and reused across forward calls, so each forward only streams
    2 bytes/elem of L from HBM (no per-call f32->bf16 repack).
    bf16 is exact for the integer Laplacian entries while |entry| < 256.
    """
    B, nv, _ = L.shape
    max_deg = float(jnp.max(Lii))
    assert max_deg < 256.0, (
        "bf16 storage of L is only exact for vertex degree < 256 "
        f"(got max degree {max_deg}); fall back to f32 L storage.")
    nv_p = _round_up(nv, 128)
    pad = nv_p - nv
    L_p = jnp.pad(L, ((0, 0), (0, pad), (0, pad))).astype(jnp.bfloat16)
    lii_p = jnp.pad(Lii, ((0, 0), (0, pad))).reshape(B, 1, nv_p)   # f32
    return L_p, lii_p


# ----------------------------------------------------------------------------
# Pallas kernel: tiled (m, k) bf16 matmul of the transposed product, f32
# accumulation directly in the resident output tile, exact normalization.
# ----------------------------------------------------------------------------
def _uniform_laplacian_kernel(L_ref, vT_ref, lii_ref, o_ref):
    # Block shapes:
    #   L_ref   (1, t, t)     bf16 = L[b, k_tile, m_tile] (== L[b, m_tile, k_tile]^T)
    #   vT_ref  (1, Dp, nv_p) bf16 = full verts^T slab, resident across (m, k)
    #   lii_ref (1, 1, t)     f32  = Lii[b, m_tile]
    #   o_ref   (1, Dp, t)    f32  = out^T[b, :, m_tile], resident across k (accumulator)
    k = pl.program_id(2)
    t = L_ref.shape[1]

    @pl.when(k == 0)
    def _():
        o_ref[0] = jnp.zeros_like(o_ref[0])

    start = pl.multiple_of(k * t, 128)
    v_blk = vT_ref[0, :, pl.ds(start, t)]              # (Dp, t) bf16, lane-aligned slice
    # Native bf16 x bf16 MXU matmul with f32 accumulation (no f32 upcast of L).
    o_ref[0] += jnp.dot(v_blk, L_ref[0], preferred_element_type=jnp.float32)

    @pl.when(k == pl.num_programs(2) - 1)
    def _():
        # Exact division: only B*nv divides total, negligible at the HBM roofline.
        o_ref[0] = o_ref[0] / (lii_ref[0] + 1e-12)


def uniform_laplacian_forward(L_p, lii_p, verts, *, tile=1024):
    """L_p: (B, nv_p, nv_p) bf16 padded symmetric Laplacian blocks,
       lii_p: (B, 1, nv_p) f32 padded diagonal, verts: (B, nv, D) f32."""
    B, nv, D = verts.shape
    nv_p = L_p.shape[1]
    Dp = _round_up(D, 8)                     # sublane-aligned coord dim

    # Tile: largest multiple of 128 that divides nv_p and fits the cap.
    cap = max(128, min(_round_up(tile, 128), nv_p))
    t = 128
    for cand in range(cap, 127, -128):
        if nv_p % cand == 0:
            t = cand
            break
    n_tiles = nv_p // t

    # Tiny per-call prep: pad + transpose + bf16-cast verts (Dp x nv_p elems).
    vT = jnp.swapaxes(
        jnp.pad(verts, ((0, 0), (0, nv_p - nv), (0, Dp - D))), 1, 2
    ).astype(jnp.bfloat16)                   # (B, Dp, nv_p)

    # Memory-bound roofline hint for XLA.
    cost = pl.CostEstimate(
        flops=2 * B * nv_p * nv_p * Dp,
        transcendentals=0,
        bytes_accessed=(B * nv_p * nv_p * 2        # L (bf16)
                        + B * nv_p * Dp * 2        # vT (bf16, once per batch)
                        + B * nv_p * Dp * 4        # out (f32)
                        + B * nv_p * 4),           # Lii
    )

    # Explicit VMEM budget: double-buffered bf16 L tiles + resident vT slab +
    # Lii tiles + resident f32 output tile.  Fits v5e/v6e/v7x scoped budgets
    # comfortably at the default t<=1024.
    vmem_needed = (2 * t * t * 2
                   + 2 * Dp * nv_p * 2
                   + 2 * t * 4
                   + 2 * Dp * t * 4)
    vmem_limit = int(min(max(vmem_needed + (8 << 20), 16 << 20), 48 << 20))

    out_T = pl.pallas_call(
        _uniform_laplacian_kernel,
        out_shape=jax.ShapeDtypeStruct((B, Dp, nv_p), jnp.float32),
        grid_spec=pltpu.PrefetchScalarGridSpec(
            num_scalar_prefetch=0,
            grid=(B, n_tiles, n_tiles),
            in_specs=[
                # L is symmetric -> fetch the (k, m) block to get L[m, k]^T
                # directly from HBM (no in-kernel transpose).
                pl.BlockSpec((1, t, t), lambda b, m, k: (b, k, m)),
                # Full verts^T slab, resident across the whole (m, k) sweep:
                # one DMA per batch instead of one per grid step.
                pl.BlockSpec((1, Dp, nv_p), lambda b, m, k: (b, 0, 0)),
                pl.BlockSpec((1, 1, t), lambda b, m, k: (b, 0, m)),
            ],
            # Constant in k -> resident accumulator; written back on (b, m) change.
            out_specs=pl.BlockSpec((1, Dp, t), lambda b, m, k: (b, 0, m)),
        ),
        compiler_params=pltpu.CompilerParams(
            dimension_semantics=("parallel", "parallel", "arbitrary"),
            vmem_limit_bytes=vmem_limit,
        ),
        cost_estimate=cost,
    )(L_p, vT, lii_p)

    # lane-dense (B, Dp, nv_p) -> user layout (B, nv, D); transpose is tiny.
    # Keep the [:nv, :D] slice: padded rows are exactly zero by construction.
    return jnp.swapaxes(out_T, 1, 2)[:, :nv, :D].astype(verts.dtype)


# ----------------------------------------------------------------------------
# Pure-JAX reference for correctness checking (full f32 path).
# ----------------------------------------------------------------------------
def uniform_laplacian_ref(L, Lii, verts):
    x = jnp.einsum("bij,bjd->bid", L, verts)
    return x / (Lii[:, :, None] + 1e-12)


if __name__ == "__main__":
    B, nv, D = 2, 64, 3         # batch, num vertices, coord dim
    F, deg = 128, 3             # num faces, face degree (triangles)

    key = jax.random.PRNGKey(0)
    k_faces, k_verts = jax.random.split(key)

    faces = jax.random.randint(k_faces, (B, F, deg), 0, nv, dtype=jnp.int32)
    verts = jax.random.normal(k_verts, (B, nv, D), dtype=jnp.float32)

    # "__init__": build once, prepare kernel operands once, reuse per forward.
    L, Lii = build_uniform_laplacian(faces, nv)
    L_p, lii_p = prepare_laplacian_operands(L, Lii)

    out = uniform_laplacian_forward(L_p, lii_p, verts)
    out = jax.block_until_ready(out)

    ref = uniform_laplacian_ref(L, Lii, verts)
    assert out.shape == (B, nv, D)
    # L entries are exact in bf16; the only deviation from the f32 reference is
    # the bf16 rounding of the verts operand on the native-bf16 MXU path
    # (~1e-3 relative), hence the modest tolerance.  The reciprocal is exact.
    assert jnp.allclose(out, ref, atol=2e-2, rtol=2e-2), float(
        jnp.max(jnp.abs(out - ref)))

    print("KERNEL_OK")
</pallas_src>

<mosaic_0001>
module attributes {stable_mosaic.version = 11 : i64} {
  func.func @_uniform_laplacian_kernel(%arg0: i32, %arg1: i32, %arg2: i32, %arg3: memref<1x128x128xbf16, #tpu.memory_space<vmem>>, %arg4: memref<1x8x128xbf16, #tpu.memory_space<vmem>>, %arg5: memref<1x1x128xf32, #tpu.memory_space<vmem>>, %arg6: memref<1x8x128xf32, #tpu.memory_space<vmem>>) attributes {dimension_semantics = [#tpu.dimension_semantics<parallel>, #tpu.dimension_semantics<parallel>, #tpu.dimension_semantics<arbitrary>], iteration_bounds = array<i64: 2, 1, 1>, scalar_prefetch = 0 : i64, scratch_operands = 0 : i64, tpu.core_type = #tpu.core_type<tc>, window_params = [{transform_indices = @transform_0, window_bounds = array<i64: 1, 128, 128>}, {transform_indices = @transform_1, window_bounds = array<i64: 1, 8, 128>}, {transform_indices = @transform_2, window_bounds = array<i64: 1, 1, 128>}, {transform_indices = @transform_3, window_bounds = array<i64: 1, 8, 128>}]} {
    %c0_i32 = arith.constant 0 : i32
    %0 = arith.cmpi eq, %arg2, %c0_i32 : i32
    %1 = arith.extui %0 : i1 to i32
    %c0_i32_0 = arith.constant 0 : i32
    %2 = arith.cmpi ne, %1, %c0_i32_0 : i32
    scf.if %2 {
      %cst_13 = arith.constant 0.000000e+00 : f32
      %20 = vector.broadcast %cst_13 : f32 to vector<8x128xf32>
      %c0_14 = arith.constant 0 : index
      %c0_15 = arith.constant 0 : index
      %c0_16 = arith.constant 0 : index
      %21 = vector.load %arg6[%c0_14, %c0_15, %c0_16] : memref<1x8x128xf32, #tpu.memory_space<vmem>>, vector<1x8x128xf32>
      %22 = vector.shape_cast %21 : vector<1x8x128xf32> to vector<8x128xf32>
      %23 = vector.shape_cast %20 : vector<8x128xf32> to vector<1x8x128xf32>
      tpu.vector_store %arg6[%c0_14, %c0_15, %c0_16], %23 {strides = array<i32>} : memref<1x8x128xf32, #tpu.memory_space<vmem>>, vector<1x8x128xf32>,
    } else {
    }
    %c128_i32 = arith.constant 128 : i32
    %3 = arith.muli %arg2, %c128_i32 : i32
    %4 = tpu.assume_multiple %3, 128 : i32
    %c0 = arith.constant 0 : index
    %c0_1 = arith.constant 0 : index
    %5 = arith.index_cast %4 : i32 to index
    %6 = vector.load %arg4[%c0, %c0_1, %5] : memref<1x8x128xbf16, #tpu.memory_space<vmem>>, vector<1x8x128xbf16>
    %7 = vector.shape_cast %6 : vector<1x8x128xbf16> to vector<8x128xbf16>
    %c0_2 = arith.constant 0 : index
    %c0_3 = arith.constant 0 : index
    %c0_4 = arith.constant 0 : index
    %8 = vector.load %arg6[%c0_2, %c0_3, %c0_4] : memref<1x8x128xf32, #tpu.memory_space<vmem>>, vector<1x8x128xf32>
    %9 = vector.shape_cast %8 : vector<1x8x128xf32> to vector<8x128xf32>
    %c0_5 = arith.constant 0 : index
    %c0_6 = arith.constant 0 : index
    %c0_7 = arith.constant 0 : index
    %10 = vector.load %arg3[%c0_5, %c0_6, %c0_7] : memref<1x128x128xbf16, #tpu.memory_space<vmem>>, vector<1x128x128xbf16>
    %11 = vector.shape_cast %10 : vector<1x128x128xbf16> to vector<128x128xbf16>
    %cst = arith.constant dense<0.000000e+00> : vector<8x128xf32>
    %12 = tpu.matmul %7, %11, %cst {dimension_numbers = #tpu.dot_dimension_numbers<[1], [0], [0], [1], [0, 0, 1, 1], [], []>} : vector<8x128xbf16>, vector<128x128xbf16>, vector<8x128xf32> -> vector<8x128xf32>
    %13 = arith.addf %9, %12 : vector<8x128xf32>
    %c0_8 = arith.constant 0 : index
    %c0_9 = arith.constant 0 : index
    %c0_10 = arith.constant 0 : index
    %14 = vector.load %arg6[%c0_8, %c0_9, %c0_10] : memref<1x8x128xf32, #tpu.memory_space<vmem>>, vector<1x8x128xf32>
    %15 = vector.shape_cast %14 : vector<1x8x128xf32> to vector<8x128xf32>
    %16 = vector.shape_cast %13 : vector<8x128xf32> to vector<1x8x128xf32>
    tpu.vector_store %arg6[%c0_8, %c0_9, %c0_10], %16 {strides = array<i32>} : memref<1x8x128xf32, #tpu.memory_space<vmem>>, vector<1x8x128xf32>,
    %c0_i32_11 = arith.constant 0 : i32
    %17 = arith.cmpi eq, %arg2, %c0_i32_11 : i32
    %18 = arith.extui %17 : i1 to i32
    %c0_i32_12 = arith.constant 0 : i32
    %19 = arith.cmpi ne, %18, %c0_i32_12 : i32
    scf.if %19 {
      %c0_13 = arith.constant 0 : index
      %c0_14 = arith.constant 0 : index
      %c0_15 = arith.constant 0 : index
      %20 = vector.load %arg6[%c0_13, %c0_14, %c0_15] : memref<1x8x128xf32, #tpu.memory_space<vmem>>, vector<1x8x128xf32>
      %21 = vector.shape_cast %20 : vector<1x8x128xf32> to vector<8x128xf32>
      %c0_16 = arith.constant 0 : index
      %c0_17 = arith.constant 0 : index
      %c0_18 = arith.constant 0 : index
      %22 = vector.load %arg5[%c0_16, %c0_17, %c0_18] : memref<1x1x128xf32, #tpu.memory_space<vmem>>, vector<1x1x128xf32>
      %23 = vector.shape_cast %22 : vector<1x1x128xf32> to vector<1x128xf32>
      %cst_19 = arith.constant 9.99999996E-13 : f32
      %24 = vector.broadcast %cst_19 : f32 to vector<1x128xf32>
      %25 = arith.addf %23, %24 : vector<1x128xf32>
      %26 = vector.broadcast %25 : vector<1x128xf32> to vector<8x128xf32>
      %27 = arith.divf %21, %26 : vector<8x128xf32>
      %c0_20 = arith.constant 0 : index
      %c0_21 = arith.constant 0 : index
      %c0_22 = arith.constant 0 : index
      %28 = vector.load %arg6[%c0_20, %c0_21, %c0_22] : memref<1x8x128xf32, #tpu.memory_space<vmem>>, vector<1x8x128xf32>
      %29 = vector.shape_cast %28 : vector<1x8x128xf32> to vector<8x128xf32>
      %30 = vector.shape_cast %27 : vector<8x128xf32> to vector<1x8x128xf32>
      tpu.vector_store %arg6[%c0_20, %c0_21, %c0_22], %30 {strides = array<i32>} : memref<1x8x128xf32, #tpu.memory_space<vmem>>, vector<1x8x128xf32>,
    } else {
    }
    return
  }
  func.func @transform_0(%arg0: i32, %arg1: i32, %arg2: i32) -> (i32, i32, i32) {
    %c0_i32 = arith.constant 0 : i32
    return %arg0, %arg2, %arg1 : i32, i32, i32
  }
  func.func @transform_1(%arg0: i32, %arg1: i32, %arg2: i32) -> (i32, i32, i32) {
    %c0_i32 = arith.constant 0 : i32
    %c0_i32_0 = arith.constant 0 : i32
    %c0_i32_1 = arith.constant 0 : i32
    return %arg0, %c0_i32, %c0_i32_0 : i32, i32, i32
  }
  func.func @transform_2(%arg0: i32, %arg1: i32, %arg2: i32) -> (i32, i32, i32) {
    %c0_i32 = arith.constant 0 : i32
    %c0_i32_0 = arith.constant 0 : i32
    return %arg0, %c0_i32, %arg1 : i32, i32, i32
  }
  func.func @transform_3(%arg0: i32, %arg1: i32, %arg2: i32) -> (i32, i32, i32) {
    %c0_i32 = arith.constant 0 : i32
    %c0_i32_0 = arith.constant 0 : i32
    return %arg0, %c0_i32, %arg1 : i32, i32, i32
  }
}

</mosaic_0001>

<llo_original>
// kernel: tpu_custom_call.1
$region0: #{tpu_custom_call.1}
  #allocation0 [shape = 'u32[]', space=smem, size = 0x4, offset = 0x4, fixed_abs, tag = 'smem constant byte address 0x4 - core index']
  #allocation1 [shape = 'u32[144,128]{1,0:T(1,128)}', space=vmem, size = 0x12000, scoped, tag = 'internal scratch']
  %s0 = inlined_call_operand.hbm [shape: bf16[2,128,128], index: 0, kind: input, shape index: {}]
  %s1 = inlined_call_operand.hbm [shape: bf16[2,8,128], index: 1, kind: input, shape index: {}]
  %s2 = inlined_call_operand.vmem [shape: f32[2,1,128], index: 2, kind: input, shape index: {}]
  %s3 = inlined_call_operand.hbm [shape: f32[2,8,128], index: 3, kind: output, shape index: {}]
  %s4 = sld [smem:[#allocation0]]
  $region61: #{tpu_custom_call.1} parent=0
    _
  %s6 = ssub.s32 1, %s4
  %s7 = scalar_select 0, %s6, %s4
  $region1: #{tpu_custom_call.1} parent=0
    #allocation2 [shape = 'u8[65536]{0}', space=vmem, size = 0x10000, scoped, tag = 'input window, operand 0']
    #allocation3 [shape = 's32[2]{0}', space=sflag, size = 0x8, scoped, tag = 'scoped memory for tpu_custom_call.1']
    #allocation4 [shape = 's32[2]{0}', space=sflag, size = 0x8, scoped, tag = 'scoped memory for tpu_custom_call.1']
    #allocation5 [shape = 'u8[4096]{0}', space=vmem, size = 0x1000, scoped, tag = 'input window, operand 1']
    #allocation6 [shape = 's32[2]{0}', space=sflag, size = 0x8, scoped, tag = 'scoped memory for tpu_custom_call.1']
    #allocation7 [shape = 'u8[8192]{0}', space=vmem, size = 0x2000, scoped, tag = 'output window, operand 0']
    %8 = vsyncpa [#allocation3], 0
    %s9 = scalar_lea.sflag [#allocation3], 1
    %10 = vsyncpa %s9, 0
    %11 = vsyncpa [#allocation6], 0
    %s12 = scalar_lea.sflag [#allocation6], 1
    %13 = vsyncpa %s12, 0
    %14 = vsyncpa [#allocation4], 0
    %s15 = scalar_lea.sflag [#allocation4], 1
    %16 = vsyncpa %s15, 0
    loop: start=0, step=1, limit=4
    $region2: #{tpu_custom_call.1} parent=1 // loop_pre_header
      _
    $region3: #{tpu_custom_call.1} parent=1 // loop_header
      %s18 = sphi 0, %s22
      %p19 = scmp.ge.s32.totalorder %s18, 4
      %s25 = sphi 0, %s44
      %s26 = sphi 0, %s40
      %s27 = sphi 0, %s36
      %s28 = sphi 0, %s25
      %s29 = sphi 0, %s26
      %s30 = sphi 0, %s27
      %s31 = sphi 0, %s28
      %s32 = sphi 0, %s29
      %s33 = sphi 0, %s30
      %s51 = sphi 0, %s53
      %s54 = sphi 0, %s51
      %s55 = sphi 0, %s54
      %s71 = sphi 0, %s55
      %s77 = sphi 0, %s79
      %s80 = sphi 0, %s77
      %s81 = sphi 0, %s80
      %s97 = sphi 0, %s81
      %s105 = sphi 0, %s107
      %s108 = sphi 0, %s105
      %s109 = sphi 0, %s108
      %s125 = sphi 0, %s109
      %s133 = sphi 0, %s135
      %s136 = sphi 0, %s133
      %s137 = sphi 0, %s136
      %s153 = sphi 0, %s137
    $region4: #{tpu_custom_call.1} parent=1 // loop_header_branch
      %21 = sbr.rel (%p19) target = $region8
    $region5: #{tpu_custom_call.1} parent=1 // loop_body
      %s23 = ssub.s32 %s18, 1
      %s24 = ssub.s32 %s18, 2
      %s34 = sadd.s32 1, %s27
      %p35 = scmp.ge.s32.totalorder %s34, 1
      %s36 = scalar_select %p35, 0, %s34
      %s37 = sadd.s32 1, %s26
      %s38 = scalar_select %p35, %s37, %s26
      %p39 = scmp.ge.s32.totalorder %s38, 1
      %s40 = scalar_select %p39, 0, %s38
      %s41 = sadd.s32 1, %s25
      %s42 = scalar_select %p39, %s41, %s25
      %p43 = scmp.ge.s32.totalorder %s42, 2
      %s44 = scalar_select %p43, 0, %s42
      %s45 = ssub.s32 %s25, %s44
      %s46 = ssub.s32 %s27, %s36
      %s47 = sor.u32 %s45, %s46
      %s48 = ssub.s32 %s26, %s40
      %s49 = sor.u32 %s47, %s48
      %p50 = scmp.eq.s32.totalorder %s49, 0
      %s52 = sadd.s32 %s51, 1
      %s53 = scalar_select %p50, %s51, %s52
      %p56 = pneg %p50
      %p57 = scmp.eq.s32.totalorder %s18, 1
      %p58 = por %p56, %p57
      %p59 = scmp.ne.s32.totalorder %s51, %s54
      %p60 = scmp.eq.s32.totalorder %s18, 0
      %p61 = por %p59, %p60
      %p62 = scmp.ne.s32.totalorder %s51, %s54
      %p63 = scmp.eq.s32.totalorder %s23, 1
      %p64 = por %p62, %p63
      %p65 = scmp.ne.s32.totalorder %s54, %s55
      %p66 = scmp.eq.s32.totalorder %s23, 0
      %p67 = por %p65, %p66
      %p68 = scmp.ne.s32.totalorder %s54, %s55
      %p69 = scmp.eq.s32.totalorder %s24, 1
      %p70 = por %p68, %p69
      %p72 = scmp.ne.s32.totalorder %s55, %s71
      %p73 = scmp.eq.s32.totalorder %s24, 0
      %p74 = por %p72, %p73
      %s75 = ssub.s32 %s25, %s44
      %p76 = scmp.eq.s32.totalorder %s75, 0
      %s78 = sadd.s32 %s77, 1
      %s79 = scalar_select %p76, %s77, %s78
      %p82 = pneg %p76
      %p83 = scmp.eq.s32.totalorder %s18, 1
      %p84 = por %p82, %p83
      %p85 = scmp.ne.s32.totalorder %s77, %s80
      %p86 = scmp.eq.s32.totalorder %s18, 0
      %p87 = por %p85, %p86
      %p88 = scmp.ne.s32.totalorder %s77, %s80
      %p89 = scmp.eq.s32.totalorder %s23, 1
      %p90 = por %p88, %p89
      %p91 = scmp.ne.s32.totalorder %s80, %s81
      %p92 = scmp.eq.s32.totalorder %s23, 0
      %p93 = por %p91, %p92
      %p94 = scmp.ne.s32.totalorder %s80, %s81
      %p95 = scmp.eq.s32.totalorder %s24, 1
      %p96 = por %p94, %p95
      %p98 = scmp.ne.s32.totalorder %s81, %s97
      %p99 = scmp.eq.s32.totalorder %s24, 0
      %p100 = por %p98, %p99
      %s101 = ssub.s32 %s25, %s44
      %s102 = ssub.s32 %s26, %s40
      %s103 = sor.u32 %s101, %s102
      %p104 = scmp.eq.s32.totalorder %s103, 0
      %s106 = sadd.s32 %s105, 1
      %s107 = scalar_select %p104, %s105, %s106
      %p110 = pneg %p104
      %p111 = scmp.eq.s32.totalorder %s18, 1
      %p112 = por %p110, %p111
      %p113 = scmp.ne.s32.totalorder %s105, %s108
      %p114 = scmp.eq.s32.totalorder %s18, 0
      %p115 = por %p113, %p114
      %p116 = scmp.ne.s32.totalorder %s105, %s108
      %p117 = scmp.eq.s32.totalorder %s23, 1
      %p118 = por %p116, %p117
      %p119 = scmp.ne.s32.totalorder %s108, %s109
      %p120 = scmp.eq.s32.totalorder %s23, 0
      %p121 = por %p119, %p120
      %p122 = scmp.ne.s32.totalorder %s108, %s109
      %p123 = scmp.eq.s32.totalorder %s24, 1
      %p124 = por %p122, %p123
      %p126 = scmp.ne.s32.totalorder %s109, %s125
      %p127 = scmp.eq.s32.totalorder %s24, 0
      %p128 = por %p126, %p127
      %s129 = ssub.s32 %s25, %s44
      %s130 = ssub.s32 %s26, %s40
      %s131 = sor.u32 %s129, %s130
      %p132 = scmp.eq.s32.totalorder %s131, 0
      %s134 = sadd.s32 %s133, 1
      %s135 = scalar_select %p132, %s133, %s134
      %p138 = pneg %p132
      %p139 = scmp.eq.s32.totalorder %s18, 1
      %p140 = por %p138, %p139
      %p141 = scmp.ne.s32.totalorder %s133, %s136
      %p142 = scmp.eq.s32.totalorder %s18, 0
      %p143 = por %p141, %p142
      %p144 = scmp.ne.s32.totalorder %s133, %s136
      %p145 = scmp.eq.s32.totalorder %s23, 1
      %p146 = por %p144, %p145
      %p147 = scmp.ne.s32.totalorder %s136, %s137
      %p148 = scmp.eq.s32.totalorder %s23, 0
      %p149 = por %p147, %p148
      %p150 = scmp.ne.s32.totalorder %s136, %s137
      %p151 = scmp.eq.s32.totalorder %s24, 1
      %p152 = por %p150, %p151
      %p154 = scmp.ne.s32.totalorder %s137, %s153
      %p155 = scmp.eq.s32.totalorder %s24, 0
      %p156 = por %p154, %p155
      %p157 = scmp.le.s32.totalorder 1, %s18
      %p158 = scmp.lt.s32.totalorder %s18, 3
      %p159 = pnand %p157, %p158
      %p160 = pneg %p159
      // Predicated region
      $region9: #{tpu_custom_call.1} parent=5 // pred_check
        _
      $region10: #{tpu_custom_call.1} parent=5 // pred_check_branch
        %162 = sbr.rel (%p159) target = $region12
      $region11: #{tpu_custom_call.1} parent=5 // pred_region
        %s163 = ssub.s32 %s18, 1
      $region12: #{tpu_custom_call.1} parent=5 // pred_fallthru
        _
      %p164 = scmp.lt.s32.totalorder %s18, 2
      // Predicated region
      $region13: #{tpu_custom_call.1} parent=5 // pred_check
        %p165 = pneg %p164
      $region14: #{tpu_custom_call.1} parent=5 // pred_check_branch
        %167 = sbr.rel (%p165) target = $region16
      $region15: #{tpu_custom_call.1} parent=5 // pred_region
        // Predicated region
        $region17: #{tpu_custom_call.1} parent=15 // pred_check
          %p168 = pneg %p61
        $region18: #{tpu_custom_call.1} parent=15 // pred_check_branch
          %170 = sbr.rel (%p168) target = $region20
        $region19: #{tpu_custom_call.1} parent=15 // pred_region
          %s171 = sand.u32 %s51, 1
          %s172 = scalar_lea.sflag [#allocation3], %s171
          %s173 = sand.u32 %s51, 1
          %s174 = smul.addr %s173, 64
          %s175 = scalar_lea.vmem [#allocation2], %s174
          %s176 = smul.u32 16, %s27
          %s178 = ssub.s32 1024, 1024
          %179 = vsyncadd %s172, %s178
          %s180 = sadd.s32 %s26, %s176
          %s181 = smul.addr %s25, 16
          %s182 = sadd.s32 %s180, %s181
          %s183 = smul.addr %s182, 64
          %s184 = scalar_lea.hbm %s0, %s183
          %s185 = sshll.u32 %s175, 4
          %s186 = int_to_ptr.vmem [resolvable:$true] %s185
          %191 = dma.hbm_to_vmem [thread:$0]  %s184, 1024, %s186, %s172, 64, 64, 4
        $region20: #{tpu_custom_call.1} parent=15 // pred_fallthru
          _
        // Predicated region
        $region21: #{tpu_custom_call.1} parent=15 // pred_check
          %p192 = pneg %p87
        $region22: #{tpu_custom_call.1} parent=15 // pred_check_branch
          %194 = sbr.rel (%p192) target = $region24
        $region23: #{tpu_custom_call.1} parent=15 // pred_region
          %s195 = sand.u32 %s77, 1
          %s196 = scalar_lea.sflag [#allocation6], %s195
          %s197 = sand.u32 %s77, 1
          %s198 = smul.addr %s197, 4
          %s199 = scalar_lea.vmem [#allocation5], %s198
          %s201 = ssub.s32 64, 64
          %202 = vsyncadd %s196, %s201
          %s203 = smul.addr %s25, 64
          %s204 = scalar_lea.hbm %s1, %s203
          %s206 = sshll.u32 %s199, 4
          %s207 = int_to_ptr.vmem [resolvable:$true] %s206
          %209 = dma.hbm_to_vmem [thread:$0]  %s204, 64, %s207, %s196
        $region24: #{tpu_custom_call.1} parent=15 // pred_fallthru
          _
        // Predicated region
        $region25: #{tpu_custom_call.1} parent=15 // pred_check
          %p210 = pneg %p115
        $region26: #{tpu_custom_call.1} parent=15 // pred_check_branch
          %212 = sbr.rel (%p210) target = $region28
        $region27: #{tpu_custom_call.1} parent=15 // pred_region
          %p213 = scmp.lt.s32.totalorder %s25, 1
          %s214 = scalar_select %p213, %s25, 1
          %p215 = scmp.lt.s32.totalorder %s26, 0
          %s216 = scalar_select %p215, %s26, 0
          %s217 = sadd.s32 %s216, %s214
          %s218 = scalar_lea.vmem %s2, %s217
        $region28: #{tpu_custom_call.1} parent=15 // pred_fallthru
          _
      $region16: #{tpu_custom_call.1} parent=5 // pred_fallthru
        _
      %p219 = scmp.le.s32.totalorder 1, %s18
      %p220 = scmp.lt.s32.totalorder %s18, 3
      %p221 = pnand %p219, %p220
      %p222 = pneg %p221
      // Predicated region
      $region29: #{tpu_custom_call.1} parent=5 // pred_check
        _
      $region30: #{tpu_custom_call.1} parent=5 // pred_check_branch
        %224 = sbr.rel (%p221) target = $region32
      $region31: #{tpu_custom_call.1} parent=5 // pred_region
        %s225 = ssub.s32 %s18, 1
        %s226 = sand.u32 %s54, 1
        %s227 = scalar_lea.sflag [#allocation3], %s226
        %s228 = sand.u32 %s54, 1
        %s229 = smul.addr %s228, 64
        %s230 = scalar_lea.vmem [#allocation2], %s229
        // Predicated region
        $region33: #{tpu_custom_call.1} parent=31 // pred_check
          %p231 = pneg %p67
        $region34: #{tpu_custom_call.1} parent=31 // pred_check_branch
          %233 = sbr.rel (%p231) target = $region36
        $region35: #{tpu_custom_call.1} parent=31 // pred_region
          %234 = dma.done %s227, 1024
        $region36: #{tpu_custom_call.1} parent=31 // pred_fallthru
          _
        %s235 = sand.u32 %s80, 1
        %s236 = scalar_lea.sflag [#allocation6], %s235
        %s237 = sand.u32 %s80, 1
        %s238 = smul.addr %s237, 4
        %s239 = scalar_lea.vmem [#allocation5], %s238
        // Predicated region
        $region37: #{tpu_custom_call.1} parent=31 // pred_check
          %p240 = pneg %p93
        $region38: #{tpu_custom_call.1} parent=31 // pred_check_branch
          %242 = sbr.rel (%p240) target = $region40
        $region39: #{tpu_custom_call.1} parent=31 // pred_region
          %243 = dma.done %s236, 64
        $region40: #{tpu_custom_call.1} parent=31 // pred_fallthru
          _
        %s244 = sand.u32 %s54, 1
        %s245 = scalar_lea.sflag [#allocation3], %s244
        %s246 = sand.u32 %s54, 1
        %s247 = smul.addr %s246, 64
        %s248 = scalar_lea.vmem [#allocation2], %s247
        %p249 = pneg %p67
        %p250 = pneg %p64
        %s251 = sand.u32 %s80, 1
        %s252 = scalar_lea.sflag [#allocation6], %s251
        %s253 = sand.u32 %s80, 1
        %s254 = smul.addr %s253, 4
        %s255 = scalar_lea.vmem [#allocation5], %s254
        %p256 = pneg %p93
        %p257 = pneg %p90
        %p258 = scmp.lt.s32.totalorder %s28, 1
        %s259 = scalar_select %p258, %s28, 1
        %p260 = scmp.lt.s32.totalorder %s29, 0
        %s261 = scalar_select %p260, %s29, 0
        %s262 = sadd.s32 %s261, %s259
        %s263 = scalar_lea.vmem %s2, %s262
        %p264 = pneg %p121
        %p265 = pneg %p118
        %p266 = pneg %p149
        %p267 = pneg %p146
        %s268 = sand.u32 %s136, 1
        %s269 = scalar_lea.sflag [#allocation4], %s268
        %s270 = sand.u32 %s136, 1
        %s271 = smul.addr %s270, 8
        %s272 = scalar_lea.vmem [#allocation7], %s271
        %s273 = smul.u32 16, %s30
        %p274 = scmp.lt.s32.totalorder %s28, 1
        %s275 = scalar_select %p274, %s28, 1
        %p276 = scmp.lt.s32.totalorder %s29, 0
        %s277 = scalar_select %p276, %s29, 0
        %s278 = sadd.s32 %s277, %s275
        %s279 = scalar_lea.vmem %s2, %s278
        %p281 = scmp.eq.s32.totalorder %s30, 0
        // Predicated region
        $region41: #{tpu_custom_call.1} parent=31 // pred_check
          %p282 = pneg %p281
        $region42: #{tpu_custom_call.1} parent=31 // pred_check_branch
          %284 = sbr.rel (%p282) target = $region44
        $region43: #{tpu_custom_call.1} parent=31 // pred_region
          %285 = vst [vmem:[%s272] sm:$0xff] 0.0
        $region44: #{tpu_custom_call.1} parent=31 // pred_fallthru
          _
        %s286 = smul.u32 %s30, 128
        %s287 = sshra.s32 %s286, 7
        %s288 = sand.u32 %s286, 127
        %s289 = smul.addr %s287, 4
        %s290 = scalar_lea.vmem %s239, %s289 [#allocation5]
        %v291 = vld [vmem:[%s290] sm:$0xf]
        %v292 = vld [vmem:[%s272] sm:$0xff]
        %v293 = vld [vmem:[%s230] sm:$0xf]
        %v294 = vld [vmem:[%s230 + $0x4] sm:$0xf]
        %v295 = vld [vmem:[%s230 + $0x8] sm:$0xf]
        %v296 = vld [vmem:[%s230 + $0xc] sm:$0xf]
        %v297 = vld [vmem:[%s230 + $0x10] sm:$0xf]
        %v298 = vld [vmem:[%s230 + $0x14] sm:$0xf]
        %v299 = vld [vmem:[%s230 + $0x18] sm:$0xf]
        %v300 = vld [vmem:[%s230 + $0x1c] sm:$0xf]
        %v301 = vld [vmem:[%s230 + $0x20] sm:$0xf]
        %v302 = vld [vmem:[%s230 + $0x24] sm:$0xf]
        %v303 = vld [vmem:[%s230 + $0x28] sm:$0xf]
        %v304 = vld [vmem:[%s230 + $0x2c] sm:$0xf]
        %v305 = vld [vmem:[%s230 + $0x30] sm:$0xf]
        %v306 = vld [vmem:[%s230 + $0x34] sm:$0xf]
        %v307 = vld [vmem:[%s230 + $0x38] sm:$0xf]
        %v308 = vld [vmem:[%s230 + $0x3c] sm:$0xf]
        %v325 = vunpack.c.l.b16 %v293
        %v326 = vunpack.c.l.b16 %v294
        %v327 = vunpack.c.l.b16 %v295
        %v328 = vunpack.c.l.b16 %v296
        %v329 = vunpack.c.l.b16 %v297
        %v330 = vunpack.c.l.b16 %v298
        %v331 = vunpack.c.l.b16 %v299
        %v332 = vunpack.c.l.b16 %v300
        %v333 = vunpack.c.l.b16 %v301
        %v334 = vunpack.c.l.b16 %v302
        %v335 = vunpack.c.l.b16 %v303
        %v336 = vunpack.c.l.b16 %v304
        %v337 = vunpack.c.l.b16 %v305
        %v338 = vunpack.c.l.b16 %v306
        %v339 = vunpack.c.l.b16 %v307
        %v340 = vunpack.c.l.b16 %v308
        %v341 = vpack.c.b16 %v326, %v325
        %v342 = vpack.c.b16 %v328, %v327
        %v343 = vpack.c.b16 %v330, %v329
        %v344 = vpack.c.b16 %v332, %v331
        %v345 = vpack.c.b16 %v334, %v333
        %v346 = vpack.c.b16 %v336, %v335
        %v347 = vpack.c.b16 %v338, %v337
        %v348 = vpack.c.b16 %v340, %v339
        %357 = vmatprep.subr.bf16.mxu0 0
        %358 = vmatpush1.bf16.msra.mxu0 %v341
        %359 = vmatprep.subr.bf16.mxu0 0
        %360 = vmatpush1.bf16.msra.mxu0 %v342
        %361 = vmatprep.subr.bf16.mxu0 0
        %362 = vmatpush1.bf16.msra.mxu0 %v343
        %363 = vmatprep.subr.bf16.mxu0 0
        %364 = vmatpush1.bf16.msra.mxu0 %v344
        %365 = vmatprep.subr.bf16.mxu0 0
        %366 = vmatpush1.bf16.msra.mxu0 %v345
        %367 = vmatprep.subr.bf16.mxu0 0
        %368 = vmatpush1.bf16.msra.mxu0 %v346
        %369 = vmatprep.subr.bf16.mxu0 0
        %370 = vmatpush1.bf16.msra.mxu0 %v347
        %371 = vmatprep.subr.bf16.mxu0 0
        %372 = vmatpush1.bf16.msra.mxu0 %v348
        %373 = vmatprep.subr.bf16.mxu0 0
        %374 = vmatpush1.bf16.msra.mxu0 0
        %375 = vmatprep.subr.bf16.mxu0 0
        %376 = vmatpush1.bf16.msra.mxu0 0
        %377 = vmatprep.subr.bf16.mxu0 0
        %378 = vmatpush1.bf16.msra.mxu0 0
        %379 = vmatprep.subr.bf16.mxu0 0
        %380 = vmatpush1.bf16.msra.mxu0 0
        %381 = vmatprep.subr.bf16.mxu0 0
        %382 = vmatpush1.bf16.msra.mxu0 0
        %383 = vmatprep.subr.bf16.mxu0 0
        %384 = vmatpush1.bf16.msra.mxu0 0
        %385 = vmatprep.subr.bf16.mxu0 0
        %386 = vmatpush1.bf16.msra.mxu0 0
        %387 = vmatprep.subr.bf16.mxu0 0
        %388 = vmatpush1.bf16.msra.mxu0 0
        %389 = vmatprep.mubr.bf16.mxu0 0
        %390 = vmatmul.mubr.bf16.gmra.mrb[0].mxu0 %v291
        %v391 = vpop.f32.mrb[0].mxu0
        %v392 = vadd.f32 0.0, %v391
        %v393 = vpop.f32.mrb[0].mxu0
        %v394 = vpop.f32.mrb[0].mxu0
        %v395 = vpop.f32.mrb[0].mxu0
        %396 = vdwg.mxu0
        %v397 = vadd.f32 %v292, %v392
        %398 = vst [vmem:[%s272] sm:$0xff] %v397
        // Predicated region
        $region45: #{tpu_custom_call.1} parent=31 // pred_check
          %p399 = pneg %p281
        $region46: #{tpu_custom_call.1} parent=31 // pred_check_branch
          %401 = sbr.rel (%p399) target = $region48
        $region47: #{tpu_custom_call.1} parent=31 // pred_region
          %v402 = vld [vmem:[%s272] sm:$0xff]
          %v403 = vld [vmem:[%s279] sm:$0x1]
          %v404 = vadd.f32 %v403, 1e-12
          %v406 = vlaneseq
          %v407 = vshrl.u32 %v406, 7
          %v408 = vsub.s32 0, %v407
          %v409 = vrot.slane %v404, %v408
          %v411 = vrcp.pop %v409
          %v412 = vmul.f32 %v402, %v411
          %413 = vst [vmem:[%s272] sm:$0xff] %v412
        $region48: #{tpu_custom_call.1} parent=31 // pred_fallthru
          _
        %s414 = sand.u32 %s136, 1
        %s415 = scalar_lea.sflag [#allocation4], %s414
        %s416 = sand.u32 %s136, 1
        %s417 = smul.addr %s416, 8
        %s418 = scalar_lea.vmem [#allocation7], %s417
        // Predicated region
        $region49: #{tpu_custom_call.1} parent=31 // pred_check
          %p419 = pneg %p146
        $region50: #{tpu_custom_call.1} parent=31 // pred_check_branch
          %421 = sbr.rel (%p419) target = $region52
        $region51: #{tpu_custom_call.1} parent=31 // pred_region
          %s423 = ssub.s32 128, 128
          %424 = vsyncadd %s415, %s423
          %s425 = sadd.s32 %s29, %s28
          %s426 = smul.addr %s425, 128
          %s427 = scalar_lea.hbm %s3, %s426
          %s429 = sshll.u32 %s418, 4
          %s430 = int_to_ptr.vmem [resolvable:$true] %s429
          %432 = dma.vmem_to_hbm [thread:$0]  %s430, 128, %s427, %s415
        $region52: #{tpu_custom_call.1} parent=31 // pred_fallthru
          _
      $region32: #{tpu_custom_call.1} parent=5 // pred_fallthru
        _
      %p433 = scmp.le.s32.totalorder 2, %s18
      // Predicated region
      $region53: #{tpu_custom_call.1} parent=5 // pred_check
        %p434 = pneg %p433
      $region54: #{tpu_custom_call.1} parent=5 // pred_check_branch
        %436 = sbr.rel (%p434) target = $region56
      $region55: #{tpu_custom_call.1} parent=5 // pred_region
        %s437 = ssub.s32 %s18, 2
        // Predicated region
        $region57: #{tpu_custom_call.1} parent=55 // pred_check
          %p438 = pneg %p152
        $region58: #{tpu_custom_call.1} parent=55 // pred_check_branch
          %440 = sbr.rel (%p438) target = $region60
        $region59: #{tpu_custom_call.1} parent=55 // pred_region
          %s441 = sand.u32 %s137, 1
          %s442 = scalar_lea.sflag [#allocation4], %s441
          %s443 = sand.u32 %s137, 1
          %s444 = smul.addr %s443, 8
          %s445 = scalar_lea.vmem [#allocation7], %s444
          %446 = dma.done %s442, 128
        $region60: #{tpu_custom_call.1} parent=55 // pred_fallthru
          _
      $region56: #{tpu_custom_call.1} parent=5 // pred_fallthru
        _
    $region6: #{tpu_custom_call.1} parent=1 // loop_footer
      %s22 = sadd.s32 1, %s18
    $region7: #{tpu_custom_call.1} parent=1 // loop_footer_branch
      %17 = sbr.rel target = $region3
    $region8: #{tpu_custom_call.1} parent=1 // loop_exit
      _
    %447 = vsyncpa [#allocation3], 1
    %s448 = scalar_lea.sflag [#allocation3], 1
    %449 = vsyncpa %s448, 1
    %450 = vsyncpa [#allocation6], 1
    %s451 = scalar_lea.sflag [#allocation6], 1
    %452 = vsyncpa %s451, 1
    %453 = vsyncpa [#allocation4], 1
    %s454 = scalar_lea.sflag [#allocation4], 1
    %455 = vsyncpa %s454, 1

</llo_original>
